<compile_context>
chip_gen: v7x
topology: tpu7x:2x2x1
jax: 0.10.0
libtpu: 0.0.40
codegen_flags: <defaults>
</compile_context>

<pallas_src>
import jax
import jax.numpy as jnp
from jax.experimental import pallas as pl
from jax.experimental.pallas import tpu as pltpu


def attention_kernel(z_ref, w1_ref, b1_ref, w2_ref, out_ref, beta_ref):
    TB, M, D = z_ref.shape
    H = w1_ref.shape[1]

    z = z_ref[...]                                     # (TB, M, D) f32
    z_flat = z.reshape(TB * M, D)                      # share one projection

    # Linear(D, H) + bias -> Tanh : single MXU matmul for all TB batches.
    h = jnp.tanh(
        jnp.dot(z_flat, w1_ref[...], preferred_element_type=jnp.float32)
        + b1_ref[...])                                 # (TB*M, H)
    h = h.reshape(TB, M, H)

    # Linear(H, 1, bias=False) as VPU multiply + lane reduce; a (·,H)@(H,1)
    # matmul would occupy a single MXU column for no benefit.
    w = jnp.sum(h * w2_ref[...], axis=-1)              # (TB, M) logits

    # softmax over M (dim=1 of the original (B, M, 1) logits), max-subtracted.
    # Exact divide (not approx reciprocal) to keep full f32 accuracy.
    m = jnp.max(w, axis=-1, keepdims=True)
    e = jnp.exp(w - m)
    denom = jnp.sum(e, axis=-1, keepdims=True)
    beta = e / denom                                   # (TB, M)

    beta_ref[...] = beta                               # lane-dense store

    # Weighted sum over M as a batched (1, M) @ (M, D) matmul on the MXU.
    out = jnp.einsum("bqm,bmd->bqd", beta[:, None, :], z,
                     preferred_element_type=jnp.float32)   # (TB, 1, D)
    out_ref[...] = out.reshape(TB, D)


def _choose_tb(B, M, D, budget_bytes=8 << 20):
    """Largest batch tile that divides B, is sublane-aligned (multiple of 8,
    or the whole batch), stays under a conservative double-buffer VMEM budget
    (safe for v7x's 64 MiB VMEM), and keeps >= 2 grid steps when possible."""
    per_batch = 2 * M * D * 4  # double-buffered f32 z tile per batch
    cap = max(1, budget_bytes // per_batch)
    candidates = [tb for tb in range(1, B + 1)
                  if B % tb == 0 and tb <= cap and (tb % 8 == 0 or tb == B)]
    if not candidates:
        return B
    multi = [tb for tb in candidates if B // tb >= 2]
    return max(multi) if multi else max(candidates)


def attention_pallas(z, w1, b1, w2):
    """z: (B, M, D) f32. Returns (out (B, D), beta (B, M, 1))."""
    B, M, D = z.shape
    H = w1.shape[1]
    b1_2d = b1.reshape(1, H).astype(jnp.float32)
    w2_row = w2.reshape(1, H).astype(jnp.float32)   # (H, 1) column -> (1, H) row

    TB = _choose_tb(B, M, D)
    grid = (B // TB,)

    out, beta = pl.pallas_call(
        attention_kernel,
        out_shape=(
            jax.ShapeDtypeStruct((B, D), jnp.float32),
            jax.ShapeDtypeStruct((B, M), jnp.float32),   # lane-dense beta
        ),
        grid_spec=pltpu.PrefetchScalarGridSpec(
            num_scalar_prefetch=0,
            grid=grid,
            in_specs=[
                pl.BlockSpec((TB, M, D), lambda b: (b, 0, 0)),   # z batch tile
                pl.BlockSpec((D, H), lambda b: (0, 0)),          # W1 (broadcast)
                pl.BlockSpec((1, H), lambda b: (0, 0)),          # b1 (broadcast)
                pl.BlockSpec((1, H), lambda b: (0, 0)),          # W2^T (broadcast)
            ],
            out_specs=[
                pl.BlockSpec((TB, D), lambda b: (b, 0)),         # out
                pl.BlockSpec((TB, M), lambda b: (b, 0)),         # beta
            ],
        ),
        compiler_params=pltpu.CompilerParams(
            dimension_semantics=("parallel",)),
    )(z, w1, b1_2d, w2_row)

    # Free layout plumbing outside the kernel: restore PyTorch's (B, M, 1).
    return out, beta.reshape(B, M, 1)


def attention_ref(z, w1, b1, w2):
    h = jnp.tanh(jnp.einsum("bmd,dh->bmh", z, w1) + b1)
    w = jnp.einsum("bmh,ho->bmo", h, w2)               # (B, M, 1)
    beta = jax.nn.softmax(w, axis=1)
    return (beta * z).sum(axis=1), beta


if __name__ == "__main__":
    # Shapes consistent with Attention(in_size=32, hidden_size=16); B=16 so
    # the batch-blocked grid (TB=8) still has 2 parallel steps.
    B, M, D, H = 16, 4, 32, 16

    key = jax.random.PRNGKey(0)
    kz, kw1, kb1, kw2 = jax.random.split(key, 4)

    z = jax.random.normal(kz, (B, M, D), dtype=jnp.float32)
    w1 = jax.random.normal(kw1, (D, H), dtype=jnp.float32) * 0.1
    b1 = jax.random.normal(kb1, (H,), dtype=jnp.float32) * 0.1
    w2 = jax.random.normal(kw2, (H, 1), dtype=jnp.float32) * 0.1

    out, beta = attention_pallas(z, w1, b1, w2)
    jax.block_until_ready((out, beta))

    out_r, beta_r = attention_ref(z, w1, b1, w2)
    assert jnp.allclose(out, out_r, atol=1e-4, rtol=1e-4), \
        float(jnp.max(jnp.abs(out - out_r)))
    assert jnp.allclose(beta, beta_r, atol=1e-4, rtol=1e-4), \
        float(jnp.max(jnp.abs(beta - beta_r)))

    print("KERNEL_OK")
</pallas_src>

<mosaic_0001>
module attributes {stable_mosaic.version = 11 : i64} {
  func.func @attention_kernel(%arg0: i32, %arg1: memref<8x4x32xf32, #tpu.memory_space<vmem>>, %arg2: memref<32x16xf32, #tpu.memory_space<vmem>>, %arg3: memref<1x16xf32, #tpu.memory_space<vmem>>, %arg4: memref<1x16xf32, #tpu.memory_space<vmem>>, %arg5: memref<8x32xf32, #tpu.memory_space<vmem>>, %arg6: memref<8x4xf32, #tpu.memory_space<vmem>>) attributes {dimension_semantics = [#tpu.dimension_semantics<parallel>], iteration_bounds = array<i64: 2>, scalar_prefetch = 0 : i64, scratch_operands = 0 : i64, tpu.core_type = #tpu.core_type<tc>, window_params = [{transform_indices = @transform_0, window_bounds = array<i64: 8, 4, 32>}, {pipeline_mode = #tpu.pipeline_mode<synchronous>, transform_indices = @transform_1, window_bounds = array<i64: 32, 16>}, {pipeline_mode = #tpu.pipeline_mode<synchronous>, transform_indices = @transform_2, window_bounds = array<i64: 1, 16>}, {pipeline_mode = #tpu.pipeline_mode<synchronous>, transform_indices = @transform_3, window_bounds = array<i64: 1, 16>}, {transform_indices = @transform_4, window_bounds = array<i64: 8, 32>}, {transform_indices = @transform_5, window_bounds = array<i64: 8, 4>}]} {
    %c0 = arith.constant 0 : index
    %c0_0 = arith.constant 0 : index
    %c0_1 = arith.constant 0 : index
    %0 = vector.load %arg1[%c0, %c0_0, %c0_1] : memref<8x4x32xf32, #tpu.memory_space<vmem>>, vector<8x4x32xf32>
    %1 = vector.shape_cast %0 : vector<8x4x32xf32> to vector<32x32xf32>
    %c0_2 = arith.constant 0 : index
    %c0_3 = arith.constant 0 : index
    %2 = vector.load %arg2[%c0_2, %c0_3] : memref<32x16xf32, #tpu.memory_space<vmem>>, vector<32x16xf32>
    %cst = arith.constant dense<0.000000e+00> : vector<32x16xf32>
    %3 = tpu.matmul %1, %2, %cst {dimension_numbers = #tpu.dot_dimension_numbers<[1], [0], [0], [1], [0, 0, 1, 1], [], []>} : vector<32x32xf32>, vector<32x16xf32>, vector<32x16xf32> -> vector<32x16xf32>
    %c0_4 = arith.constant 0 : index
    %c0_5 = arith.constant 0 : index
    %4 = vector.load %arg3[%c0_4, %c0_5] : memref<1x16xf32, #tpu.memory_space<vmem>>, vector<1x16xf32>
    %5 = vector.broadcast %4 : vector<1x16xf32> to vector<32x16xf32>
    %6 = arith.addf %3, %5 : vector<32x16xf32>
    %7 = math.tanh %6 : vector<32x16xf32>
    %8 = vector.shape_cast %7 : vector<32x16xf32> to vector<8x4x16xf32>
    %c0_6 = arith.constant 0 : index
    %c0_7 = arith.constant 0 : index
    %9 = vector.load %arg4[%c0_6, %c0_7] : memref<1x16xf32, #tpu.memory_space<vmem>>, vector<1x16xf32>
    %10 = vector.shape_cast %9 : vector<1x16xf32> to vector<1x1x16xf32>
    %11 = vector.broadcast %10 : vector<1x1x16xf32> to vector<8x4x16xf32>
    %12 = arith.mulf %8, %11 : vector<8x4x16xf32>
    %cst_8 = arith.constant dense<0.000000e+00> : vector<8x4xf32>
    %13 = vector.multi_reduction <add>, %12, %cst_8 [2] : vector<8x4x16xf32> to vector<8x4xf32>
    %cst_9 = arith.constant dense<0xFF800000> : vector<8xf32>
    %14 = vector.multi_reduction <maximumf>, %13, %cst_9 [1] : vector<8x4xf32> to vector<8xf32>
    %15 = vector.shape_cast %14 : vector<8xf32> to vector<8x1xf32>
    %16 = vector.broadcast %15 : vector<8x1xf32> to vector<8x4xf32>
    %17 = arith.subf %13, %16 : vector<8x4xf32>
    %18 = math.exp %17 : vector<8x4xf32>
    %cst_10 = arith.constant dense<0.000000e+00> : vector<8xf32>
    %19 = vector.multi_reduction <add>, %18, %cst_10 [1] : vector<8x4xf32> to vector<8xf32>
    %20 = vector.shape_cast %19 : vector<8xf32> to vector<8x1xf32>
    %21 = vector.broadcast %20 : vector<8x1xf32> to vector<8x4xf32>
    %22 = arith.divf %18, %21 : vector<8x4xf32>
    %c0_11 = arith.constant 0 : index
    %c0_12 = arith.constant 0 : index
    %23 = vector.load %arg6[%c0_11, %c0_12] : memref<8x4xf32, #tpu.memory_space<vmem>>, vector<8x4xf32>
    tpu.vector_store %arg6[%c0_11, %c0_12], %22 {strides = array<i32>} : memref<8x4xf32, #tpu.memory_space<vmem>>, vector<8x4xf32>,
    %24 = vector.shape_cast %22 : vector<8x4xf32> to vector<8x1x4xf32>
    "tpu.trace_start"() <{level = 10 : i32, message = "bqm,bmd->bqd"}> : () -> ()
    %cst_13 = arith.constant dense<0.000000e+00> : vector<8x1x32xf32>
    %25 = tpu.matmul %24, %0, %cst_13 {dimension_numbers = #tpu.dot_dimension_numbers<[2], [1], [1], [2], [0, 0, 0, 1, 1, 2], [0], [0]>} : vector<8x1x4xf32>, vector<8x4x32xf32>, vector<8x1x32xf32> -> vector<8x1x32xf32>
    "tpu.trace_stop"() : () -> ()
    %26 = vector.shape_cast %25 : vector<8x1x32xf32> to vector<8x32xf32>
    %c0_14 = arith.constant 0 : index
    %c0_15 = arith.constant 0 : index
    %27 = vector.load %arg5[%c0_14, %c0_15] : memref<8x32xf32, #tpu.memory_space<vmem>>, vector<8x32xf32>
    tpu.vector_store %arg5[%c0_14, %c0_15], %26 {strides = array<i32>} : memref<8x32xf32, #tpu.memory_space<vmem>>, vector<8x32xf32>,
    return
  }
  func.func @transform_0(%arg0: i32) -> (i32, i32, i32) {
    %c0_i32 = arith.constant 0 : i32
    %c0_i32_0 = arith.constant 0 : i32
    %c0_i32_1 = arith.constant 0 : i32
    return %arg0, %c0_i32, %c0_i32_0 : i32, i32, i32
  }
  func.func @transform_1(%arg0: i32) -> (i32, i32) {
    %c0_i32 = arith.constant 0 : i32
    %c0_i32_0 = arith.constant 0 : i32
    %c0_i32_1 = arith.constant 0 : i32
    return %c0_i32, %c0_i32_0 : i32, i32
  }
  func.func @transform_2(%arg0: i32) -> (i32, i32) {
    %c0_i32 = arith.constant 0 : i32
    %c0_i32_0 = arith.constant 0 : i32
    %c0_i32_1 = arith.constant 0 : i32
    return %c0_i32, %c0_i32_0 : i32, i32
  }
  func.func @transform_3(%arg0: i32) -> (i32, i32) {
    %c0_i32 = arith.constant 0 : i32
    %c0_i32_0 = arith.constant 0 : i32
    %c0_i32_1 = arith.constant 0 : i32
    return %c0_i32, %c0_i32_0 : i32, i32
  }
  func.func @transform_4(%arg0: i32) -> (i32, i32) {
    %c0_i32 = arith.constant 0 : i32
    %c0_i32_0 = arith.constant 0 : i32
    return %arg0, %c0_i32 : i32, i32
  }
  func.func @transform_5(%arg0: i32) -> (i32, i32) {
    %c0_i32 = arith.constant 0 : i32
    %c0_i32_0 = arith.constant 0 : i32
    return %arg0, %c0_i32 : i32, i32
  }
}

</mosaic_0001>

<llo_original>
// kernel: tpu_custom_call.1
$region0: #{tpu_custom_call.1}
  #allocation0 [shape = 'u32[]', space=smem, size = 0x4, offset = 0x4, fixed_abs, tag = 'smem constant byte address 0x4 - core index']
  #allocation1 [shape = 'u32[144,128]{1,0:T(1,128)}', space=vmem, size = 0x12000, scoped, tag = 'internal scratch']
  %s0 = inlined_call_operand.hbm [shape: f32[16,4,32], index: 0, kind: input, shape index: {}]
  %s1 = inlined_call_operand.vmem [shape: f32[32,16], index: 1, kind: input, shape index: {}]
  %s2 = inlined_call_operand.vmem [shape: f32[1,16], index: 2, kind: input, shape index: {}]
  %s3 = inlined_call_operand.vmem [shape: f32[1,16], index: 3, kind: input, shape index: {}]
  %s4 = inlined_call_operand.hbm [shape: f32[16,32], index: 4, kind: output, shape index: {0}]
  %s5 = inlined_call_operand.vmem [shape: f32[16,4], index: 5, kind: output, shape index: {1}]
  %6 = xla_tuple %s4, %s5
  %s7 = sld [smem:[#allocation0]]
  $region61: #{tpu_custom_call.1} parent=0
    _
  %s9 = ssub.s32 1, %s7
  %s10 = scalar_select 0, %s9, %s7
  $region1: #{tpu_custom_call.1} parent=0
    #allocation2 [shape = 'u8[32768]{0}', space=vmem, size = 0x8000, scoped, tag = 'input window, operand 0']
    #allocation3 [shape = 's32[2]{0}', space=sflag, size = 0x8, scoped, tag = 'scoped memory for tpu_custom_call.1']
    #allocation4 [shape = 's32[2]{0}', space=sflag, size = 0x8, scoped, tag = 'scoped memory for tpu_custom_call.1']
    #allocation5 [shape = 'u8[8192]{0}', space=vmem, size = 0x2000, scoped, tag = 'output window, operand 0']
    %11 = vsyncpa [#allocation3], 0
    %s12 = scalar_lea.sflag [#allocation3], 1
    %13 = vsyncpa %s12, 0
    %14 = vsyncpa [#allocation4], 0
    %s15 = scalar_lea.sflag [#allocation4], 1
    %16 = vsyncpa %s15, 0
    loop: start=0, step=1, limit=4
    $region2: #{tpu_custom_call.1} parent=1 // loop_pre_header
      _
    $region3: #{tpu_custom_call.1} parent=1 // loop_header
      %s18 = sphi 0, %s22
      %p19 = scmp.ge.s32.totalorder %s18, 4
      %s28 = sphi 0, %s30
      %s31 = sphi 0, %s28
      %s32 = sphi 0, %s31
      %s48 = sphi 0, %s32
      %s52 = sphi 0, %s52
      %s54 = sphi 0, %s52
      %s55 = sphi 0, %s54
      %s69 = sphi 0, %s55
      %s73 = sphi 0, %s73
      %s75 = sphi 0, %s73
      %s76 = sphi 0, %s75
      %s90 = sphi 0, %s76
      %s94 = sphi 0, %s94
      %s96 = sphi 0, %s94
      %s97 = sphi 0, %s96
      %s111 = sphi 0, %s97
      %s117 = sphi 0, %s119
      %s120 = sphi 0, %s117
      %s121 = sphi 0, %s120
      %s137 = sphi 0, %s121
      %s143 = sphi 0, %s145
      %s146 = sphi 0, %s143
      %s147 = sphi 0, %s146
      %s163 = sphi 0, %s147
    $region4: #{tpu_custom_call.1} parent=1 // loop_header_branch
      %21 = sbr.rel (%p19) target = $region8
    $region5: #{tpu_custom_call.1} parent=1 // loop_body
      %s23 = ssub.s32 %s18, 1
      %s24 = ssub.s32 %s18, 2
      %s25 = sadd.s32 %s18, 1
      %s26 = ssub.s32 %s18, %s25
      %p27 = scmp.eq.s32.totalorder %s26, 0
      %s29 = sadd.s32 %s28, 1
      %s30 = scalar_select %p27, %s28, %s29
      %p33 = pneg %p27
      %p34 = scmp.eq.s32.totalorder %s18, 1
      %p35 = por %p33, %p34
      %p36 = scmp.ne.s32.totalorder %s28, %s31
      %p37 = scmp.eq.s32.totalorder %s18, 0
      %p38 = por %p36, %p37
      %p39 = scmp.ne.s32.totalorder %s28, %s31
      %p40 = scmp.eq.s32.totalorder %s23, 1
      %p41 = por %p39, %p40
      %p42 = scmp.ne.s32.totalorder %s31, %s32
      %p43 = scmp.eq.s32.totalorder %s23, 0
      %p44 = por %p42, %p43
      %p45 = scmp.ne.s32.totalorder %s31, %s32
      %p46 = scmp.eq.s32.totalorder %s24, 1
      %p47 = por %p45, %p46
      %p49 = scmp.ne.s32.totalorder %s32, %s48
      %p50 = scmp.eq.s32.totalorder %s24, 0
      %p51 = por %p49, %p50
      %s53 = sadd.s32 %s52, 1
      %p56 = scmp.eq.s32.totalorder %s18, 1
      %p57 = scmp.ne.s32.totalorder %s52, %s54
      %p58 = scmp.eq.s32.totalorder %s18, 0
      %p59 = por %p57, %p58
      %p60 = scmp.ne.s32.totalorder %s52, %s54
      %p61 = scmp.eq.s32.totalorder %s23, 1
      %p62 = por %p60, %p61
      %p63 = scmp.ne.s32.totalorder %s54, %s55
      %p64 = scmp.eq.s32.totalorder %s23, 0
      %p65 = por %p63, %p64
      %p66 = scmp.ne.s32.totalorder %s54, %s55
      %p67 = scmp.eq.s32.totalorder %s24, 1
      %p68 = por %p66, %p67
      %p70 = scmp.ne.s32.totalorder %s55, %s69
      %p71 = scmp.eq.s32.totalorder %s24, 0
      %p72 = por %p70, %p71
      %s74 = sadd.s32 %s73, 1
      %p77 = scmp.eq.s32.totalorder %s18, 1
      %p78 = scmp.ne.s32.totalorder %s73, %s75
      %p79 = scmp.eq.s32.totalorder %s18, 0
      %p80 = por %p78, %p79
      %p81 = scmp.ne.s32.totalorder %s73, %s75
      %p82 = scmp.eq.s32.totalorder %s23, 1
      %p83 = por %p81, %p82
      %p84 = scmp.ne.s32.totalorder %s75, %s76
      %p85 = scmp.eq.s32.totalorder %s23, 0
      %p86 = por %p84, %p85
      %p87 = scmp.ne.s32.totalorder %s75, %s76
      %p88 = scmp.eq.s32.totalorder %s24, 1
      %p89 = por %p87, %p88
      %p91 = scmp.ne.s32.totalorder %s76, %s90
      %p92 = scmp.eq.s32.totalorder %s24, 0
      %p93 = por %p91, %p92
      %s95 = sadd.s32 %s94, 1
      %p98 = scmp.eq.s32.totalorder %s18, 1
      %p99 = scmp.ne.s32.totalorder %s94, %s96
      %p100 = scmp.eq.s32.totalorder %s18, 0
      %p101 = por %p99, %p100
      %p102 = scmp.ne.s32.totalorder %s94, %s96
      %p103 = scmp.eq.s32.totalorder %s23, 1
      %p104 = por %p102, %p103
      %p105 = scmp.ne.s32.totalorder %s96, %s97
      %p106 = scmp.eq.s32.totalorder %s23, 0
      %p107 = por %p105, %p106
      %p108 = scmp.ne.s32.totalorder %s96, %s97
      %p109 = scmp.eq.s32.totalorder %s24, 1
      %p110 = por %p108, %p109
      %p112 = scmp.ne.s32.totalorder %s97, %s111
      %p113 = scmp.eq.s32.totalorder %s24, 0
      %p114 = por %p112, %p113
      %s115 = ssub.s32 %s18, %s25
      %p116 = scmp.eq.s32.totalorder %s115, 0
      %s118 = sadd.s32 %s117, 1
      %s119 = scalar_select %p116, %s117, %s118
      %p122 = pneg %p116
      %p123 = scmp.eq.s32.totalorder %s18, 1
      %p124 = por %p122, %p123
      %p125 = scmp.ne.s32.totalorder %s117, %s120
      %p126 = scmp.eq.s32.totalorder %s18, 0
      %p127 = por %p125, %p126
      %p128 = scmp.ne.s32.totalorder %s117, %s120
      %p129 = scmp.eq.s32.totalorder %s23, 1
      %p130 = por %p128, %p129
      %p131 = scmp.ne.s32.totalorder %s120, %s121
      %p132 = scmp.eq.s32.totalorder %s23, 0
      %p133 = por %p131, %p132
      %p134 = scmp.ne.s32.totalorder %s120, %s121
      %p135 = scmp.eq.s32.totalorder %s24, 1
      %p136 = por %p134, %p135
      %p138 = scmp.ne.s32.totalorder %s121, %s137
      %p139 = scmp.eq.s32.totalorder %s24, 0
      %p140 = por %p138, %p139
      %s141 = ssub.s32 %s18, %s25
      %p142 = scmp.eq.s32.totalorder %s141, 0
      %s144 = sadd.s32 %s143, 1
      %s145 = scalar_select %p142, %s143, %s144
      %p148 = pneg %p142
      %p149 = scmp.eq.s32.totalorder %s18, 1
      %p150 = por %p148, %p149
      %p151 = scmp.ne.s32.totalorder %s143, %s146
      %p152 = scmp.eq.s32.totalorder %s18, 0
      %p153 = por %p151, %p152
      %p154 = scmp.ne.s32.totalorder %s143, %s146
      %p155 = scmp.eq.s32.totalorder %s23, 1
      %p156 = por %p154, %p155
      %p157 = scmp.ne.s32.totalorder %s146, %s147
      %p158 = scmp.eq.s32.totalorder %s23, 0
      %p159 = por %p157, %p158
      %p160 = scmp.ne.s32.totalorder %s146, %s147
      %p161 = scmp.eq.s32.totalorder %s24, 1
      %p162 = por %p160, %p161
      %p164 = scmp.ne.s32.totalorder %s147, %s163
      %p165 = scmp.eq.s32.totalorder %s24, 0
      %p166 = por %p164, %p165
      %p167 = scmp.le.s32.totalorder 1, %s18
      %p168 = scmp.lt.s32.totalorder %s18, 3
      %p169 = pnand %p167, %p168
      %p170 = pneg %p169
      // Predicated region
      $region9: #{tpu_custom_call.1} parent=5 // pred_check
        _
      $region10: #{tpu_custom_call.1} parent=5 // pred_check_branch
        %172 = sbr.rel (%p169) target = $region12
      $region11: #{tpu_custom_call.1} parent=5 // pred_region
        %s173 = ssub.s32 %s18, 1
        // Predicated region
        $region13: #{tpu_custom_call.1} parent=11 // pred_check
          %p174 = pneg %p65
        $region14: #{tpu_custom_call.1} parent=11 // pred_check_branch
          %176 = sbr.rel (%p174) target = $region16
        $region15: #{tpu_custom_call.1} parent=11 // pred_region
          _
        $region16: #{tpu_custom_call.1} parent=11 // pred_fallthru
          _
        // Predicated region
        $region17: #{tpu_custom_call.1} parent=11 // pred_check
          %p177 = pneg %p86
        $region18: #{tpu_custom_call.1} parent=11 // pred_check_branch
          %179 = sbr.rel (%p177) target = $region20
        $region19: #{tpu_custom_call.1} parent=11 // pred_region
          _
        $region20: #{tpu_custom_call.1} parent=11 // pred_fallthru
          _
        // Predicated region
        $region21: #{tpu_custom_call.1} parent=11 // pred_check
          %p180 = pneg %p107
        $region22: #{tpu_custom_call.1} parent=11 // pred_check_branch
          %182 = sbr.rel (%p180) target = $region24
        $region23: #{tpu_custom_call.1} parent=11 // pred_region
          _
        $region24: #{tpu_custom_call.1} parent=11 // pred_fallthru
          _
      $region12: #{tpu_custom_call.1} parent=5 // pred_fallthru
        _
      %p183 = scmp.lt.s32.totalorder %s18, 2
      // Predicated region
      $region25: #{tpu_custom_call.1} parent=5 // pred_check
        %p184 = pneg %p183
      $region26: #{tpu_custom_call.1} parent=5 // pred_check_branch
        %186 = sbr.rel (%p184) target = $region28
      $region27: #{tpu_custom_call.1} parent=5 // pred_region
        // Predicated region
        $region29: #{tpu_custom_call.1} parent=27 // pred_check
          %p187 = pneg %p38
        $region30: #{tpu_custom_call.1} parent=27 // pred_check_branch
          %189 = sbr.rel (%p187) target = $region32
        $region31: #{tpu_custom_call.1} parent=27 // pred_region
          %s190 = sand.u32 %s28, 1
          %s191 = scalar_lea.sflag [#allocation3], %s190
          %s192 = sand.u32 %s28, 1
          %s193 = smul.addr %s192, 32
          %s194 = scalar_lea.vmem [#allocation2], %s193
          %s195 = smul.u32 8, %s18
          %s197 = ssub.s32 512, 512
          %198 = vsyncadd %s191, %s197
          %s199 = smul.addr %s195, 64
          %s200 = scalar_lea.hbm %s0, %s199
          %s201 = sshll.u32 %s194, 4
          %s202 = int_to_ptr.vmem [resolvable:$true] %s201
          %207 = dma.hbm_to_vmem [thread:$0]  %s200, 512, %s202, %s191, 64, 64, 4
        $region32: #{tpu_custom_call.1} parent=27 // pred_fallthru
          _
      $region28: #{tpu_custom_call.1} parent=5 // pred_fallthru
        _
      %p208 = scmp.le.s32.totalorder 1, %s18
      %p209 = scmp.lt.s32.totalorder %s18, 3
      %p210 = pnand %p208, %p209
      %p211 = pneg %p210
      // Predicated region
      $region33: #{tpu_custom_call.1} parent=5 // pred_check
        _
      $region34: #{tpu_custom_call.1} parent=5 // pred_check_branch
        %213 = sbr.rel (%p210) target = $region36
      $region35: #{tpu_custom_call.1} parent=5 // pred_region
        %s214 = ssub.s32 %s18, 1
        %s215 = sand.u32 %s31, 1
        %s216 = scalar_lea.sflag [#allocation3], %s215
        %s217 = sand.u32 %s31, 1
        %s218 = smul.addr %s217, 32
        %s219 = scalar_lea.vmem [#allocation2], %s218
        // Predicated region
        $region37: #{tpu_custom_call.1} parent=35 // pred_check
          %p220 = pneg %p44
        $region38: #{tpu_custom_call.1} parent=35 // pred_check_branch
          %222 = sbr.rel (%p220) target = $region40
        $region39: #{tpu_custom_call.1} parent=35 // pred_region
          %223 = dma.done %s216, 512
        $region40: #{tpu_custom_call.1} parent=35 // pred_fallthru
          _
        %s224 = sand.u32 %s31, 1
        %s225 = scalar_lea.sflag [#allocation3], %s224
        %s226 = sand.u32 %s31, 1
        %s227 = smul.addr %s226, 32
        %s228 = scalar_lea.vmem [#allocation2], %s227
        %p229 = pneg %p44
        %p230 = pneg %p41
        %p231 = pneg %p65
        %p232 = pneg %p62
        %p233 = pneg %p86
        %p234 = pneg %p83
        %p235 = pneg %p107
        %p236 = pneg %p104
        %p237 = pneg %p133
        %p238 = pneg %p130
        %s239 = sand.u32 %s120, 1
        %s240 = scalar_lea.sflag [#allocation4], %s239
        %s241 = sand.u32 %s120, 1
        %s242 = smul.addr %s241, 8
        %s243 = scalar_lea.vmem [#allocation5], %s242
        %p244 = pneg %p159
        %p245 = pneg %p156
        %p246 = scmp.lt.s32.totalorder %s23, 1
        %s247 = scalar_select %p246, %s23, 1
        %s248 = smul.addr %s247, 8
        %s249 = scalar_lea.vmem %s5, %s248
        %s250 = smul.u32 8, %s23
        %p251 = scmp.lt.s32.totalorder %s23, 1
        %s252 = scalar_select %p251, %s23, 1
        %s253 = smul.addr %s252, 8
        %s254 = scalar_lea.vmem %s5, %s253
        %v255 = vld [vmem:[%s219] sm:$0xf]
        %v256 = vld [vmem:[%s219 + $0x4] sm:$0xf]
        %v257 = vld [vmem:[%s219 + $0x8] sm:$0xf]
        %v258 = vld [vmem:[%s219 + $0xc] sm:$0xf]
        %v259 = vld [vmem:[%s219 + $0x10] sm:$0xf]
        %v260 = vld [vmem:[%s219 + $0x14] sm:$0xf]
        %v261 = vld [vmem:[%s219 + $0x18] sm:$0xf]
        %v262 = vld [vmem:[%s219 + $0x1c] sm:$0xf]
        %v263 = vld [vmem:[%s1] sm:$0xff]
        %v264 = vld [vmem:[%s1 + $0x8] sm:$0xff]
        %v265 = vld [vmem:[%s1 + $0x10] sm:$0xff]
        %v266 = vld [vmem:[%s1 + $0x18] sm:$0xff]
        %v267 = vld [vmem:[%s2] sm:$0x1]
        %v269 = vlaneseq
        %v270 = vshrl.u32 %v269, 7
        %v271 = vsub.s32 0, %v270
        %v272 = vrot.slane %v267, %v271
        %v282 = vcombine.low %v255, %v256
        %v283 = vcombine.low %v257, %v258
        %v284 = vcombine.low %v259, %v260
        %v285 = vcombine.low %v261, %v262
        %vm286 = vcmask 261120
        %v287 = vsel %vm286, %v282, 0
        %v289 = vsel %vm286, %v283, 0
        %v291 = vsel %vm286, %v284, 0
        %v293 = vsel %vm286, %v285, 0
        %295 = vmatprep.subr.mxu0 0.0
        %296 = vmatpush1.msra.mxu0 %v263
        %297 = vmatprep.subr.mxu0 0.0
        %298 = vmatpush1.msra.mxu0 %v264
        %299 = vmatprep.subr.mxu0 0.0
        %300 = vmatpush1.msra.mxu0 %v265
        %301 = vmatprep.subr.mxu0 0.0
        %302 = vmatpush1.msra.mxu0 %v266
        %303 = vmatprep.subr.mxu0 0.0
        %304 = vmatpush1.msra.mxu0 0.0
        %305 = vmatprep.subr.mxu0 0.0
        %306 = vmatpush1.msra.mxu0 0.0
        %307 = vmatprep.subr.mxu0 0.0
        %308 = vmatpush1.msra.mxu0 0.0
        %309 = vmatprep.subr.mxu0 0.0
        %310 = vmatpush1.msra.mxu0 0.0
        %311 = vmatprep.subr.mxu0 0.0
        %312 = vmatpush1.msra.mxu0 0.0
        %313 = vmatprep.subr.mxu0 0.0
        %314 = vmatpush1.msra.mxu0 0.0
        %315 = vmatprep.subr.mxu0 0.0
        %316 = vmatpush1.msra.mxu0 0.0
        %317 = vmatprep.subr.mxu0 0.0
        %318 = vmatpush1.msra.mxu0 0.0
        %319 = vmatprep.subr.mxu0 0.0
        %320 = vmatpush1.msra.mxu0 0.0
        %321 = vmatprep.subr.mxu0 0.0
        %322 = vmatpush1.msra.mxu0 0.0
        %323 = vmatprep.subr.mxu0 0.0
        %324 = vmatpush1.msra.mxu0 0.0
        %325 = vmatprep.subr.mxu0 0.0
        %326 = vmatpush1.msra.mxu0 0.0
        %327 = vmatprep.subr.mxu0 0.0
        %328 = vmatpush1.msra.mxu0 0.0
        %329 = vmatprep.subr.mxu0 0.0
        %330 = vmatpush1.msra.mxu0 0.0
        %331 = vmatprep.subr.mxu0 0.0
        %332 = vmatpush1.msra.mxu0 0.0
        %333 = vmatprep.subr.mxu0 0.0
        %334 = vmatpush1.msra.mxu0 0.0
        %335 = vmatprep.subr.mxu0 0.0
        %336 = vmatpush1.msra.mxu0 0.0
        %337 = vmatprep.subr.mxu0 0.0
        %338 = vmatpush1.msra.mxu0 0.0
        %339 = vmatprep.subr.mxu0 0.0
        %340 = vmatpush1.msra.mxu0 0.0
        %341 = vmatprep.subr.mxu0 0.0
        %342 = vmatpush1.msra.mxu0 0.0
        %343 = vmatprep.subr.mxu0 0.0
        %344 = vmatpush1.msra.mxu0 0.0
        %345 = vmatprep.subr.mxu0 0.0
        %346 = vmatpush1.msra.mxu0 0.0
        %347 = vmatprep.subr.mxu0 0.0
        %348 = vmatpush1.msra.mxu0 0.0
        %349 = vmatprep.subr.mxu0 0.0
        %350 = vmatpush1.msra.mxu0 0.0
        %351 = vmatprep.subr.mxu0 0.0
        %352 = vmatpush1.msra.mxu0 0.0
        %353 = vmatprep.subr.mxu0 0.0
        %354 = vmatpush1.msra.mxu0 0.0
        %355 = vmatprep.subr.mxu0 0.0
        %356 = vmatpush1.msra.mxu0 0.0
        %357 = vmatprep.subr.mxu0 0.0
        %358 = vmatpush1.msra.mxu0 0.0
        %359 = vmatprep.mubr.f32.mxu0 0.0
        %360 = vmatmul.mubr.f32.gmra.mrb[0].mxu0 %v287
        %v361 = vpop.f32.mrb[0].mxu0
        %v362 = vadd.f32 %v272, %v361
        %v363 = vpop.f32.mrb[0].mxu0
        %364 = vmatprep.mubr.f32.mxu0 0.0
        %365 = vmatmul.mubr.f32.gmra.mrb[0].mxu0 %v289
        %v366 = vpop.f32.mrb[0].mxu0
        %v367 = vadd.f32 %v272, %v366
        %v368 = vpop.f32.mrb[0].mxu0
        %369 = vmatprep.mubr.f32.mxu0 0.0
        %370 = vmatmul.mubr.f32.gmra.mrb[0].mxu0 %v291
        %v371 = vpop.f32.mrb[0].mxu0
        %v372 = vadd.f32 %v272, %v371
        %v373 = vpop.f32.mrb[0].mxu0
        %374 = vmatprep.mubr.f32.mxu0 0.0
        %375 = vmatmul.mubr.f32.gmra.mrb[0].mxu0 %v293
        %v376 = vpop.f32.mrb[0].mxu0
        %v377 = vadd.f32 %v272, %v376
        %v378 = vpop.f32.mrb[0].mxu0
        %379 = vdwg.mxu0
        %v380 = vtanh.pop %v362
        %v381 = vtanh.pop %v367
        %v382 = vtanh.pop %v372
        %v383 = vtanh.pop %v377
        %v388 = vcombine.high %v380, %v380
        %v389 = vcombine.high %v381, %v381
        %v390 = vcombine.high %v382, %v382
        %v391 = vcombine.high %v383, %v383
        %v396 = vld [vmem:[%s3] sm:$0x1]
        %v398 = vlaneseq
        %v399 = vshrl.u32 %v398, 7
        %v400 = vsub.s32 0, %v399
        %v401 = vrot.slane %v396, %v400
        %v403 = vmul.f32 %v380, %v401
        %v404 = vmul.f32 %v388, %v401
        %v405 = vmul.f32 %v381, %v401
        %v406 = vmul.f32 %v389, %v401
        %v407 = vmul.f32 %v382, %v401
        %v408 = vmul.f32 %v390, %v401
        %v409 = vmul.f32 %v383, %v401
        %v410 = vmul.f32 %v391, %v401
        %vm411 = vcmask 125952
        %v412 = vsel %vm411, %v403, 0.0
        %413 = vadd.xlane.f32.xlu0 %v412
        %v414 = vpop.xlane.xlu0 %413
        %v415 = vsel %vm411, %v404, 0.0
        %416 = vadd.xlane.f32.xlu0 %v415
        %v417 = vpop.xlane.xlu0 %416
        %v418 = vsel %vm411, %v405, 0.0
        %419 = vadd.xlane.f32.xlu0 %v418
        %v420 = vpop.xlane.xlu0 %419
        %v421 = vsel %vm411, %v406, 0.0
        %422 = vadd.xlane.f32.xlu0 %v421
        %v423 = vpop.xlane.xlu0 %422
        %v424 = vsel %vm411, %v407, 0.0
        %425 = vadd.xlane.f32.xlu0 %v424
        %v426 = vpop.xlane.xlu0 %425
        %v427 = vsel %vm411, %v408, 0.0
        %428 = vadd.xlane.f32.xlu0 %v427
        %v429 = vpop.xlane.xlu0 %428
        %v430 = vsel %vm411, %v409, 0.0
        %431 = vadd.xlane.f32.xlu0 %v430
        %v432 = vpop.xlane.xlu0 %431
        %v433 = vsel %vm411, %v410, 0.0
        %434 = vadd.xlane.f32.xlu0 %v433
        %v435 = vpop.xlane.xlu0 %434
        %v444 = vlaneseq
        %v445 = vand.u32 %v444, 127
        %v446 = vlaneseq
        %v447 = vshrl.u32 %v446, 7
        %v448 = vsub.s32 %v445, %v447
        %v449 = vrot.slane %v414, %v448
        %v450 = vlaneseq
        %v451 = vshrl.u32 %v450, 7
        %v452 = vsub.s32 %v445, %v451
        %v453 = vrot.slane %v417, %v452
        %v454 = vlaneseq
        %v455 = vshrl.u32 %v454, 7
        %v456 = vsub.s32 %v445, %v455
        %v457 = vrot.slane %v420, %v456
        %v458 = vlaneseq
        %v459 = vshrl.u32 %v458, 7
        %v460 = vsub.s32 %v445, %v459
        %v461 = vrot.slane %v423, %v460
        %v462 = vlaneseq
        %v463 = vshrl.u32 %v462, 7
        %v464 = vsub.s32 %v445, %v463
        %v465 = vrot.slane %v426, %v464
        %v466 = vlaneseq
        %v467 = vshrl.u32 %v466, 7
        %v468 = vsub.s32 %v445, %v467
        %v469 = vrot.slane %v429, %v468
        %v470 = vlaneseq
        %v471 = vshrl.u32 %v470, 7
        %v472 = vsub.s32 %v445, %v471
        %v473 = vrot.slane %v432, %v472
        %v474 = vlaneseq
        %v475 = vshrl.u32 %v474, 7
        %v476 = vsub.s32 %v445, %v475
        %v477 = vrot.slane %v435, %v476
        %vm478 = vcmask 1041409
        %v479 = vsel %vm478, %v453, %v449
        %vm480 = vcmask 1042434
        %v481 = vsel %vm480, %v457, %v479
        %vm482 = vcmask 1043459
        %v483 = vsel %vm482, %v461, %v481
        %vm484 = vcmask 1044484
        %v485 = vsel %vm484, %v465, %v483
        %vm486 = vcmask 1045509
        %v487 = vsel %vm486, %v469, %v485
        %vm488 = vcmask 1046534
        %v489 = vsel %vm488, %v473, %v487
        %vm490 = vcmask 1047559
        %v491 = vsel %vm490, %v477, %v489
        %vm493 = vcmask 31744
        %v494 = vsel %vm493, %v491, -inf
        %495 = vmax.xlane.f32.xlu0 %v494
        %v496 = vpop.xlane.xlu0 %495
        %v498 = vlaneseq
        %v499 = vshrl.u32 %v498, 7
        %v500 = vsub.s32 0, %v499
        %v501 = vrot.slane %v496, %v500
        %v502 = vlaneseq
        %v503 = vshrl.u32 %v502, 7
        %v504 = vsub.s32 1, %v503
        %v505 = vrot.slane %v496, %v504
        %v506 = vlaneseq
        %v507 = vshrl.u32 %v506, 7
        %v508 = vsub.s32 2, %v507
        %v509 = vrot.slane %v496, %v508
        %v510 = vlaneseq
        %v511 = vshrl.u32 %v510, 7
        %v512 = vsub.s32 3, %v511
        %v513 = vrot.slane %v496, %v512
        %v514 = vlaneseq
        %v515 = vshrl.u32 %v514, 7
        %v516 = vsub.s32 4, %v515
        %v517 = vrot.slane %v496, %v516
        %v518 = vlaneseq
        %v519 = vshrl.u32 %v518, 7
        %v520 = vsub.s32 5, %v519
        %v521 = vrot.slane %v496, %v520
        %v522 = vlaneseq
        %v523 = vshrl.u32 %v522, 7
        %v524 = vsub.s32 6, %v523
        %v525 = vrot.slane %v496, %v524
        %v526 = vlaneseq
        %v527 = vshrl.u32 %v526, 7
        %v528 = vsub.s32 7, %v527
        %v529 = vrot.slane %v496, %v528
        %v538 = vsub.f32 %v414, %v501
        %v539 = vsub.f32 %v417, %v505
        %v540 = vsub.f32 %v420, %v509
        %v541 = vsub.f32 %v423, %v513
        %v542 = vsub.f32 %v426, %v517
        %v543 = vsub.f32 %v429, %v521
        %v544 = vsub.f32 %v432, %v525
        %v545 = vsub.f32 %v435, %v529
        %v546 = vmul.f32 %v538, 1.442695
        %v547 = vpow.pop %v546
        %v548 = vmul.f32 %v539, 1.442695
        %v549 = vpow.pop %v548
        %v550 = vmul.f32 %v540, 1.442695
        %v551 = vpow.pop %v550
        %v552 = vmul.f32 %v541, 1.442695
        %v553 = vpow.pop %v552
        %v554 = vmul.f32 %v542, 1.442695
        %v555 = vpow.pop %v554
        %v556 = vmul.f32 %v543, 1.442695
        %v557 = vpow.pop %v556
        %v558 = vmul.f32 %v544, 1.442695
        %v559 = vpow.pop %v558
        %v560 = vmul.f32 %v545, 1.442695
        %v561 = vpow.pop %v560
        %570 = vset.pattern.permute.xlu0 0
        %571 = vperm.xlu0 %570, %v547
        %v572 = vpop.permute.xlu0 %571
        %573 = vset.pattern.permute.xlu0 0
        %574 = vperm.xlu0 %573, %v549
        %v575 = vpop.permute.xlu0 %574
        %576 = vset.pattern.permute.xlu0 0
        %577 = vperm.xlu0 %576, %v551
        %v578 = vpop.permute.xlu0 %577
        %579 = vset.pattern.permute.xlu0 0
        %580 = vperm.xlu0 %579, %v553
        %v581 = vpop.permute.xlu0 %580
        %582 = vset.pattern.permute.xlu0 0
        %583 = vperm.xlu0 %582, %v555
        %v584 = vpop.permute.xlu0 %583
        %585 = vset.pattern.permute.xlu0 0
        %586 = vperm.xlu0 %585, %v557
        %v587 = vpop.permute.xlu0 %586
        %588 = vset.pattern.permute.xlu0 0
        %589 = vperm.xlu0 %588, %v559
        %v590 = vpop.permute.xlu0 %589
        %591 = vset.pattern.permute.xlu0 0
        %592 = vperm.xlu0 %591, %v561
        %v593 = vpop.permute.xlu0 %592
        %v594 = vlaneseq
        %v595 = vshrl.u32 %v594, 7
        %v596 = vsub.s32 %v445, %v595
        %v597 = vrot.slane %v572, %v596
        %v598 = vlaneseq
        %v599 = vshrl.u32 %v598, 7
        %v600 = vsub.s32 %v445, %v599
        %v601 = vrot.slane %v575, %v600
        %v602 = vlaneseq
        %v603 = vshrl.u32 %v602, 7
        %v604 = vsub.s32 %v445, %v603
        %v605 = vrot.slane %v578, %v604
        %v606 = vlaneseq
        %v607 = vshrl.u32 %v606, 7
        %v608 = vsub.s32 %v445, %v607
        %v609 = vrot.slane %v581, %v608
        %v610 = vlaneseq
        %v611 = vshrl.u32 %v610, 7
        %v612 = vsub.s32 %v445, %v611
        %v613 = vrot.slane %v584, %v612
        %v614 = vlaneseq
        %v615 = vshrl.u32 %v614, 7
        %v616 = vsub.s32 %v445, %v615
        %v617 = vrot.slane %v587, %v616
        %v618 = vlaneseq
        %v619 = vshrl.u32 %v618, 7
        %v620 = vsub.s32 %v445, %v619
        %v621 = vrot.slane %v590, %v620
        %v622 = vlaneseq
        %v623 = vshrl.u32 %v622, 7
        %v624 = vsub.s32 %v445, %v623
        %v625 = vrot.slane %v593, %v624
        %v626 = vsel %vm478, %v601, %v597
        %v627 = vsel %vm480, %v605, %v626
        %v628 = vsel %vm482, %v609, %v627
        %v629 = vsel %vm484, %v613, %v628
        %v630 = vsel %vm486, %v617, %v629
        %v631 = vsel %vm488, %v621, %v630
        %v632 = vsel %vm490, %v625, %v631
        %v634 = vsel %vm493, %v632, 0.0
        %635 = vadd.xlane.f32.xlu0 %v634
        %v636 = vpop.xlane.xlu0 %635
        %v638 = vlaneseq
        %v639 = vshrl.u32 %v638, 7
        %v640 = vsub.s32 0, %v639
        %v641 = vrot.slane %v636, %v640
        %v642 = vlaneseq
        %v643 = vshrl.u32 %v642, 7
        %v644 = vsub.s32 1, %v643
        %v645 = vrot.slane %v636, %v644
        %v646 = vlaneseq
        %v647 = vshrl.u32 %v646, 7
        %v648 = vsub.s32 2, %v647
        %v649 = vrot.slane %v636, %v648
        %v650 = vlaneseq
        %v651 = vshrl.u32 %v650, 7
        %v652 = vsub.s32 3, %v651
        %v653 = vrot.slane %v636, %v652
        %v654 = vlaneseq
        %v655 = vshrl.u32 %v654, 7
        %v656 = vsub.s32 4, %v655
        %v657 = vrot.slane %v636, %v656
        %v658 = vlaneseq
        %v659 = vshrl.u32 %v658, 7
        %v660 = vsub.s32 5, %v659
        %v661 = vrot.slane %v636, %v660
        %v662 = vlaneseq
        %v663 = vshrl.u32 %v662, 7
        %v664 = vsub.s32 6, %v663
        %v665 = vrot.slane %v636, %v664
        %v666 = vlaneseq
        %v667 = vshrl.u32 %v666, 7
        %v668 = vsub.s32 7, %v667
        %v669 = vrot.slane %v636, %v668
        %v678 = vrcp.pop %v641
        %v679 = vmul.f32 %v547, %v678
        %v680 = vrcp.pop %v645
        %v681 = vmul.f32 %v549, %v680
        %v682 = vrcp.pop %v649
        %v683 = vmul.f32 %v551, %v682
        %v684 = vrcp.pop %v653
        %v685 = vmul.f32 %v553, %v684
        %v686 = vrcp.pop %v657
        %v687 = vmul.f32 %v555, %v686
        %v688 = vrcp.pop %v661
        %v689 = vmul.f32 %v557, %v688
        %v690 = vrcp.pop %v665
        %v691 = vmul.f32 %v559, %v690
        %v692 = vrcp.pop %v669
        %v693 = vmul.f32 %v561, %v692
        %702 = vset.pattern.permute.xlu0 0
        %703 = vperm.xlu0 %702, %v679
        %v704 = vpop.permute.xlu0 %703
        %705 = vset.pattern.permute.xlu0 0
        %706 = vperm.xlu0 %705, %v681
        %v707 = vpop.permute.xlu0 %706
        %708 = vset.pattern.permute.xlu0 0
        %709 = vperm.xlu0 %708, %v683
        %v710 = vpop.permute.xlu0 %709
        %711 = vset.pattern.permute.xlu0 0
        %712 = vperm.xlu0 %711, %v685
        %v713 = vpop.permute.xlu0 %712
        %714 = vset.pattern.permute.xlu0 0
        %715 = vperm.xlu0 %714, %v687
        %v716 = vpop.permute.xlu0 %715
        %717 = vset.pattern.permute.xlu0 0
        %718 = vperm.xlu0 %717, %v689
        %v719 = vpop.permute.xlu0 %718
        %720 = vset.pattern.permute.xlu0 0
        %721 = vperm.xlu0 %720, %v691
        %v722 = vpop.permute.xlu0 %721
        %723 = vset.pattern.permute.xlu0 0
        %724 = vperm.xlu0 %723, %v693
        %v725 = vpop.permute.xlu0 %724
        %v726 = vlaneseq
        %v727 = vshrl.u32 %v726, 7
        %v728 = vsub.s32 %v445, %v727
        %v729 = vrot.slane %v704, %v728
        %v730 = vlaneseq
        %v731 = vshrl.u32 %v730, 7
        %v732 = vsub.s32 %v445, %v731
        %v733 = vrot.slane %v707, %v732
        %v734 = vlaneseq
        %v735 = vshrl.u32 %v734, 7
        %v736 = vsub.s32 %v445, %v735
        %v737 = vrot.slane %v710, %v736
        %v738 = vlaneseq
        %v739 = vshrl.u32 %v738, 7
        %v740 = vsub.s32 %v445, %v739
        %v741 = vrot.slane %v713, %v740
        %v742 = vlaneseq
        %v743 = vshrl.u32 %v742, 7
        %v744 = vsub.s32 %v445, %v743
        %v745 = vrot.slane %v716, %v744
        %v746 = vlaneseq
        %v747 = vshrl.u32 %v746, 7
        %v748 = vsub.s32 %v445, %v747
        %v749 = vrot.slane %v719, %v748
        %v750 = vlaneseq
        %v751 = vshrl.u32 %v750, 7
        %v752 = vsub.s32 %v445, %v751
        %v753 = vrot.slane %v722, %v752
        %v754 = vlaneseq
        %v755 = vshrl.u32 %v754, 7
        %v756 = vsub.s32 %v445, %v755
        %v757 = vrot.slane %v725, %v756
        %v758 = vsel %vm478, %v733, %v729
        %v759 = vsel %vm480, %v737, %v758
        %v760 = vsel %vm482, %v741, %v759
        %v761 = vsel %vm484, %v745, %v760
        %v762 = vsel %vm486, %v749, %v761
        %v763 = vsel %vm488, %v753, %v762
        %v764 = vsel %vm490, %v757, %v763
        %766 = vst.msk [vmem:[%s254] sm:$0xff] %vm493, %v764
        %v767 = vsel %vm493, %v729, 0
        %vm769 = vcmask 1043456
        %v770 = vsel %vm769, %v255, 0
        %772 = vmatprep.subr.mxu0 0.0
        %773 = vmatpush1.msra.mxu0 %v770
        %774 = vmatprep.subr.mxu0 0.0
        %775 = vmatpush1.msra.mxu0 0.0
        %776 = vmatprep.subr.mxu0 0.0
        %777 = vmatpush1.msra.mxu0 0.0
        %778 = vmatprep.subr.mxu0 0.0
        %779 = vmatpush1.msra.mxu0 0.0
        %780 = vmatprep.subr.mxu0 0.0
        %781 = vmatpush1.msra.mxu0 0.0
        %782 = vmatprep.subr.mxu0 0.0
        %783 = vmatpush1.msra.mxu0 0.0
        %784 = vmatprep.subr.mxu0 0.0
        %785 = vmatpush1.msra.mxu0 0.0
        %786 = vmatprep.subr.mxu0 0.0
        %787 = vmatpush1.msra.mxu0 0.0
        %788 = vmatprep.subr.mxu0 0.0
        %789 = vmatpush1.msra.mxu0 0.0
        %790 = vmatprep.subr.mxu0 0.0
        %791 = vmatpush1.msra.mxu0 0.0
        %792 = vmatprep.subr.mxu0 0.0
        %793 = vmatpush1.msra.mxu0 0.0
        %794 = vmatprep.subr.mxu0 0.0
        %795 = vmatpush1.msra.mxu0 0.0
        %796 = vmatprep.subr.mxu0 0.0
        %797 = vmatpush1.msra.mxu0 0.0
        %798 = vmatprep.subr.mxu0 0.0
        %799 = vmatpush1.msra.mxu0 0.0
        %800 = vmatprep.subr.mxu0 0.0
        %801 = vmatpush1.msra.mxu0 0.0
        %802 = vmatprep.subr.mxu0 0.0
        %803 = vmatpush1.msra.mxu0 0.0
        %804 = vmatprep.subr.mxu0 0.0
        %805 = vmatpush1.msra.mxu0 0.0
        %806 = vmatprep.subr.mxu0 0.0
        %807 = vmatpush1.msra.mxu0 0.0
        %808 = vmatprep.subr.mxu0 0.0
        %809 = vmatpush1.msra.mxu0 0.0
        %810 = vmatprep.subr.mxu0 0.0
        %811 = vmatpush1.msra.mxu0 0.0
        %812 = vmatprep.subr.mxu0 0.0
        %813 = vmatpush1.msra.mxu0 0.0
        %814 = vmatprep.subr.mxu0 0.0
        %815 = vmatpush1.msra.mxu0 0.0
        %816 = vmatprep.subr.mxu0 0.0
        %817 = vmatpush1.msra.mxu0 0.0
        %818 = vmatprep.subr.mxu0 0.0
        %819 = vmatpush1.msra.mxu0 0.0
        %820 = vmatprep.subr.mxu0 0.0
        %821 = vmatpush1.msra.mxu0 0.0
        %822 = vmatprep.subr.mxu0 0.0
        %823 = vmatpush1.msra.mxu0 0.0
        %824 = vmatprep.subr.mxu0 0.0
        %825 = vmatpush1.msra.mxu0 0.0
        %826 = vmatprep.subr.mxu0 0.0
        %827 = vmatpush1.msra.mxu0 0.0
        %828 = vmatprep.subr.mxu0 0.0
        %829 = vmatpush1.msra.mxu0 0.0
        %830 = vmatprep.subr.mxu0 0.0
        %831 = vmatpush1.msra.mxu0 0.0
        %832 = vmatprep.subr.mxu0 0.0
        %833 = vmatpush1.msra.mxu0 0.0
        %834 = vmatprep.subr.mxu0 0.0
        %835 = vmatpush1.msra.mxu0 0.0
        %836 = vmatprep.mubr.f32.mxu0 0.0
        %837 = vmatmul.mubr.f32.gmra.mrb[0].mxu0 %v767
        %v838 = vpop.f32.mrb[0].mxu0
        %v839 = vadd.f32 0.0, %v838
        %v840 = vpop.f32.mrb[0].mxu0
        %841 = vdwg.mxu0
        %v842 = vsel %vm493, %v733, 0
        %v844 = vsel %vm769, %v256, 0
        %846 = vmatprep.subr.mxu0 0.0
        %847 = vmatpush1.msra.mxu0 %v844
        %848 = vmatprep.subr.mxu0 0.0
        %849 = vmatpush1.msra.mxu0 0.0
        %850 = vmatprep.subr.mxu0 0.0
        %851 = vmatpush1.msra.mxu0 0.0
        %852 = vmatprep.subr.mxu0 0.0
        %853 = vmatpush1.msra.mxu0 0.0
        %854 = vmatprep.subr.mxu0 0.0
        %855 = vmatpush1.msra.mxu0 0.0
        %856 = vmatprep.subr.mxu0 0.0
        %857 = vmatpush1.msra.mxu0 0.0
        %858 = vmatprep.subr.mxu0 0.0
        %859 = vmatpush1.msra.mxu0 0.0
        %860 = vmatprep.subr.mxu0 0.0
        %861 = vmatpush1.msra.mxu0 0.0
        %862 = vmatprep.subr.mxu0 0.0
        %863 = vmatpush1.msra.mxu0 0.0
        %864 = vmatprep.subr.mxu0 0.0
        %865 = vmatpush1.msra.mxu0 0.0
        %866 = vmatprep.subr.mxu0 0.0
        %867 = vmatpush1.msra.mxu0 0.0
        %868 = vmatprep.subr.mxu0 0.0
        %869 = vmatpush1.msra.mxu0 0.0
        %870 = vmatprep.subr.mxu0 0.0
        %871 = vmatpush1.msra.mxu0 0.0
        %872 = vmatprep.subr.mxu0 0.0
        %873 = vmatpush1.msra.mxu0 0.0
        %874 = vmatprep.subr.mxu0 0.0
        %875 = vmatpush1.msra.mxu0 0.0
        %876 = vmatprep.subr.mxu0 0.0
        %877 = vmatpush1.msra.mxu0 0.0
        %878 = vmatprep.subr.mxu0 0.0
        %879 = vmatpush1.msra.mxu0 0.0
        %880 = vmatprep.subr.mxu0 0.0
        %881 = vmatpush1.msra.mxu0 0.0
        %882 = vmatprep.subr.mxu0 0.0
        %883 = vmatpush1.msra.mxu0 0.0
        %884 = vmatprep.subr.mxu0 0.0
        %885 = vmatpush1.msra.mxu0 0.0
        %886 = vmatprep.subr.mxu0 0.0
        %887 = vmatpush1.msra.mxu0 0.0
        %888 = vmatprep.subr.mxu0 0.0
        %889 = vmatpush1.msra.mxu0 0.0
        %890 = vmatprep.subr.mxu0 0.0
        %891 = vmatpush1.msra.mxu0 0.0
        %892 = vmatprep.subr.mxu0 0.0
        %893 = vmatpush1.msra.mxu0 0.0
        %894 = vmatprep.subr.mxu0 0.0
        %895 = vmatpush1.msra.mxu0 0.0
        %896 = vmatprep.subr.mxu0 0.0
        %897 = vmatpush1.msra.mxu0 0.0
        %898 = vmatprep.subr.mxu0 0.0
        %899 = vmatpush1.msra.mxu0 0.0
        %900 = vmatprep.subr.mxu0 0.0
        %901 = vmatpush1.msra.mxu0 0.0
        %902 = vmatprep.subr.mxu0 0.0
        %903 = vmatpush1.msra.mxu0 0.0
        %904 = vmatprep.subr.mxu0 0.0
        %905 = vmatpush1.msra.mxu0 0.0
        %906 = vmatprep.subr.mxu0 0.0
        %907 = vmatpush1.msra.mxu0 0.0
        %908 = vmatprep.subr.mxu0 0.0
        %909 = vmatpush1.msra.mxu0 0.0
        %910 = vmatprep.mubr.f32.mxu0 0.0
        %911 = vmatmul.mubr.f32.gmra.mrb[0].mxu0 %v842
        %v912 = vpop.f32.mrb[0].mxu0
        %v913 = vadd.f32 0.0, %v912
        %v914 = vpop.f32.mrb[0].mxu0
        %915 = vdwg.mxu0
        %v916 = vsel %vm493, %v737, 0
        %v918 = vsel %vm769, %v257, 0
        %920 = vmatprep.subr.mxu0 0.0
        %921 = vmatpush1.msra.mxu0 %v918
        %922 = vmatprep.subr.mxu0 0.0
        %923 = vmatpush1.msra.mxu0 0.0
        %924 = vmatprep.subr.mxu0 0.0
        %925 = vmatpush1.msra.mxu0 0.0
        %926 = vmatprep.subr.mxu0 0.0
        %927 = vmatpush1.msra.mxu0 0.0
        %928 = vmatprep.subr.mxu0 0.0
        %929 = vmatpush1.msra.mxu0 0.0
        %930 = vmatprep.subr.mxu0 0.0
        %931 = vmatpush1.msra.mxu0 0.0
        %932 = vmatprep.subr.mxu0 0.0
        %933 = vmatpush1.msra.mxu0 0.0
        %934 = vmatprep.subr.mxu0 0.0
        %935 = vmatpush1.msra.mxu0 0.0
        %936 = vmatprep.subr.mxu0 0.0
        %937 = vmatpush1.msra.mxu0 0.0
        %938 = vmatprep.subr.mxu0 0.0
        %939 = vmatpush1.msra.mxu0 0.0
        %940 = vmatprep.subr.mxu0 0.0
        %941 = vmatpush1.msra.mxu0 0.0
        %942 = vmatprep.subr.mxu0 0.0
        %943 = vmatpush1.msra.mxu0 0.0
        %944 = vmatprep.subr.mxu0 0.0
        %945 = vmatpush1.msra.mxu0 0.0
        %946 = vmatprep.subr.mxu0 0.0
        %947 = vmatpush1.msra.mxu0 0.0
        %948 = vmatprep.subr.mxu0 0.0
        %949 = vmatpush1.msra.mxu0 0.0
        %950 = vmatprep.subr.mxu0 0.0
        %951 = vmatpush1.msra.mxu0 0.0
        %952 = vmatprep.subr.mxu0 0.0
        %953 = vmatpush1.msra.mxu0 0.0
        %954 = vmatprep.subr.mxu0 0.0
        %955 = vmatpush1.msra.mxu0 0.0
        %956 = vmatprep.subr.mxu0 0.0
        %957 = vmatpush1.msra.mxu0 0.0
        %958 = vmatprep.subr.mxu0 0.0
        %959 = vmatpush1.msra.mxu0 0.0
        %960 = vmatprep.subr.mxu0 0.0
        %961 = vmatpush1.msra.mxu0 0.0
        %962 = vmatprep.subr.mxu0 0.0
        %963 = vmatpush1.msra.mxu0 0.0
        %964 = vmatprep.subr.mxu0 0.0
        %965 = vmatpush1.msra.mxu0 0.0
        %966 = vmatprep.subr.mxu0 0.0
        %967 = vmatpush1.msra.mxu0 0.0
        %968 = vmatprep.subr.mxu0 0.0
        %969 = vmatpush1.msra.mxu0 0.0
        %970 = vmatprep.subr.mxu0 0.0
        %971 = vmatpush1.msra.mxu0 0.0
        %972 = vmatprep.subr.mxu0 0.0
        %973 = vmatpush1.msra.mxu0 0.0
        %974 = vmatprep.subr.mxu0 0.0
        %975 = vmatpush1.msra.mxu0 0.0
        %976 = vmatprep.subr.mxu0 0.0
        %977 = vmatpush1.msra.mxu0 0.0
        %978 = vmatprep.subr.mxu0 0.0
        %979 = vmatpush1.msra.mxu0 0.0
        %980 = vmatprep.subr.mxu0 0.0
        %981 = vmatpush1.msra.mxu0 0.0
        %982 = vmatprep.subr.mxu0 0.0
        %983 = vmatpush1.msra.mxu0 0.0
        %984 = vmatprep.mubr.f32.mxu0 0.0
        %985 = vmatmul.mubr.f32.gmra.mrb[0].mxu0 %v916
        %v986 = vpop.f32.mrb[0].mxu0
        %v987 = vadd.f32 0.0, %v986
        %v988 = vpop.f32.mrb[0].mxu0
        %989 = vdwg.mxu0
        %v990 = vsel %vm493, %v741, 0
        %v992 = vsel %vm769, %v258, 0
        %994 = vmatprep.subr.mxu0 0.0
        %995 = vmatpush1.msra.mxu0 %v992
        %996 = vmatprep.subr.mxu0 0.0
        %997 = vmatpush1.msra.mxu0 0.0
        %998 = vmatprep.subr.mxu0 0.0
        %999 = vmatpush1.msra.mxu0 0.0
        %1000 = vmatprep.subr.mxu0 0.0
        %1001 = vmatpush1.msra.mxu0 0.0
        %1002 = vmatprep.subr.mxu0 0.0
        %1003 = vmatpush1.msra.mxu0 0.0
        %1004 = vmatprep.subr.mxu0 0.0
        %1005 = vmatpush1.msra.mxu0 0.0
        %1006 = vmatprep.subr.mxu0 0.0
        %1007 = vmatpush1.msra.mxu0 0.0
        %1008 = vmatprep.subr.mxu0 0.0
        %1009 = vmatpush1.msra.mxu0 0.0
        %1010 = vmatprep.subr.mxu0 0.0
        %1011 = vmatpush1.msra.mxu0 0.0
        %1012 = vmatprep.subr.mxu0 0.0
        %1013 = vmatpush1.msra.mxu0 0.0
        %1014 = vmatprep.subr.mxu0 0.0
        %1015 = vmatpush1.msra.mxu0 0.0
        %1016 = vmatprep.subr.mxu0 0.0
        %1017 = vmatpush1.msra.mxu0 0.0
        %1018 = vmatprep.subr.mxu0 0.0
        %1019 = vmatpush1.msra.mxu0 0.0
        %1020 = vmatprep.subr.mxu0 0.0
        %1021 = vmatpush1.msra.mxu0 0.0
        %1022 = vmatprep.subr.mxu0 0.0
        %1023 = vmatpush1.msra.mxu0 0.0
        %1024 = vmatprep.subr.mxu0 0.0
        %1025 = vmatpush1.msra.mxu0 0.0
        %1026 = vmatprep.subr.mxu0 0.0
        %1027 = vmatpush1.msra.mxu0 0.0
        %1028 = vmatprep.subr.mxu0 0.0
        %1029 = vmatpush1.msra.mxu0 0.0
        %1030 = vmatprep.subr.mxu0 0.0
        %1031 = vmatpush1.msra.mxu0 0.0
        %1032 = vmatprep.subr.mxu0 0.0
        %1033 = vmatpush1.msra.mxu0 0.0
        %1034 = vmatprep.subr.mxu0 0.0
        %1035 = vmatpush1.msra.mxu0 0.0
        %1036 = vmatprep.subr.mxu0 0.0
        %1037 = vmatpush1.msra.mxu0 0.0
        %1038 = vmatprep.subr.mxu0 0.0
        %1039 = vmatpush1.msra.mxu0 0.0
        %1040 = vmatprep.subr.mxu0 0.0
        %1041 = vmatpush1.msra.mxu0 0.0
        %1042 = vmatprep.subr.mxu0 0.0
        %1043 = vmatpush1.msra.mxu0 0.0
        %1044 = vmatprep.subr.mxu0 0.0
        %1045 = vmatpush1.msra.mxu0 0.0
        %1046 = vmatprep.subr.mxu0 0.0
        %1047 = vmatpush1.msra.mxu0 0.0
        %1048 = vmatprep.subr.mxu0 0.0
        %1049 = vmatpush1.msra.mxu0 0.0
        %1050 = vmatprep.subr.mxu0 0.0
        %1051 = vmatpush1.msra.mxu0 0.0
        %1052 = vmatprep.subr.mxu0 0.0
        %1053 = vmatpush1.msra.mxu0 0.0
        %1054 = vmatprep.subr.mxu0 0.0
        %1055 = vmatpush1.msra.mxu0 0.0
        %1056 = vmatprep.subr.mxu0 0.0
        %1057 = vmatpush1.msra.mxu0 0.0
        %1058 = vmatprep.mubr.f32.mxu0 0.0
        %1059 = vmatmul.mubr.f32.gmra.mrb[0].mxu0 %v990
        %v1060 = vpop.f32.mrb[0].mxu0
        %v1061 = vadd.f32 0.0, %v1060
        %v1062 = vpop.f32.mrb[0].mxu0
        %1063 = vdwg.mxu0
        %v1064 = vsel %vm493, %v745, 0
        %v1066 = vsel %vm769, %v259, 0
        %1068 = vmatprep.subr.mxu0 0.0
        %1069 = vmatpush1.msra.mxu0 %v1066
        %1070 = vmatprep.subr.mxu0 0.0
        %1071 = vmatpush1.msra.mxu0 0.0
        %1072 = vmatprep.subr.mxu0 0.0
        %1073 = vmatpush1.msra.mxu0 0.0
        %1074 = vmatprep.subr.mxu0 0.0
        %1075 = vmatpush1.msra.mxu0 0.0
        %1076 = vmatprep.subr.mxu0 0.0
        %1077 = vmatpush1.msra.mxu0 0.0
        %1078 = vmatprep.subr.mxu0 0.0
        %1079 = vmatpush1.msra.mxu0 0.0
        %1080 = vmatprep.subr.mxu0 0.0
        %1081 = vmatpush1.msra.mxu0 0.0
        %1082 = vmatprep.subr.mxu0 0.0
        %1083 = vmatpush1.msra.mxu0 0.0
        %1084 = vmatprep.subr.mxu0 0.0
        %1085 = vmatpush1.msra.mxu0 0.0
        %1086 = vmatprep.subr.mxu0 0.0
        %1087 = vmatpush1.msra.mxu0 0.0
        %1088 = vmatprep.subr.mxu0 0.0
        %1089 = vmatpush1.msra.mxu0 0.0
        %1090 = vmatprep.subr.mxu0 0.0
        %1091 = vmatpush1.msra.mxu0 0.0
        %1092 = vmatprep.subr.mxu0 0.0
        %1093 = vmatpush1.msra.mxu0 0.0
        %1094 = vmatprep.subr.mxu0 0.0
        %1095 = vmatpush1.msra.mxu0 0.0
        %1096 = vmatprep.subr.mxu0 0.0
        %1097 = vmatpush1.msra.mxu0 0.0
        %1098 = vmatprep.subr.mxu0 0.0
        %1099 = vmatpush1.msra.mxu0 0.0
        %1100 = vmatprep.subr.mxu0 0.0
        %1101 = vmatpush1.msra.mxu0 0.0
        %1102 = vmatprep.subr.mxu0 0.0
        %1103 = vmatpush1.msra.mxu0 0.0
        %1104 = vmatprep.subr.mxu0 0.0
        %1105 = vmatpush1.msra.mxu0 0.0
        %1106 = vmatprep.subr.mxu0 0.0
        %1107 = vmatpush1.msra.mxu0 0.0
        %1108 = vmatprep.subr.mxu0 0.0
        %1109 = vmatpush1.msra.mxu0 0.0
        %1110 = vmatprep.subr.mxu0 0.0
        %1111 = vmatpush1.msra.mxu0 0.0
        %1112 = vmatprep.subr.mxu0 0.0
        %1113 = vmatpush1.msra.mxu0 0.0
        %1114 = vmatprep.subr.mxu0 0.0
        %1115 = vmatpush1.msra.mxu0 0.0
        %1116 = vmatprep.subr.mxu0 0.0
        %1117 = vmatpush1.msra.mxu0 0.0
        %1118 = vmatprep.subr.mxu0 0.0
        %1119 = vmatpush1.msra.mxu0 0.0
        %1120 = vmatprep.subr.mxu0 0.0
        %1121 = vmatpush1.msra.mxu0 0.0
        %1122 = vmatprep.subr.mxu0 0.0
        %1123 = vmatpush1.msra.mxu0 0.0
        %1124 = vmatprep.subr.mxu0 0.0
        %1125 = vmatpush1.msra.mxu0 0.0
        %1126 = vmatprep.subr.mxu0 0.0
        %1127 = vmatpush1.msra.mxu0 0.0
        %1128 = vmatprep.subr.mxu0 0.0
        %1129 = vmatpush1.msra.mxu0 0.0
        %1130 = vmatprep.subr.mxu0 0.0
        %1131 = vmatpush1.msra.mxu0 0.0
        %1132 = vmatprep.mubr.f32.mxu0 0.0
        %1133 = vmatmul.mubr.f32.gmra.mrb[0].mxu0 %v1064
        %v1134 = vpop.f32.mrb[0].mxu0
        %v1135 = vadd.f32 0.0, %v1134
        %v1136 = vpop.f32.mrb[0].mxu0
        %1137 = vdwg.mxu0
        %v1138 = vsel %vm493, %v749, 0
        %v1140 = vsel %vm769, %v260, 0
        %1142 = vmatprep.subr.mxu0 0.0
        %1143 = vmatpush1.msra.mxu0 %v1140
        %1144 = vmatprep.subr.mxu0 0.0
        %1145 = vmatpush1.msra.mxu0 0.0
        %1146 = vmatprep.subr.mxu0 0.0
        %1147 = vmatpush1.msra.mxu0 0.0
        %1148 = vmatprep.subr.mxu0 0.0
        %1149 = vmatpush1.msra.mxu0 0.0
        %1150 = vmatprep.subr.mxu0 0.0
        %1151 = vmatpush1.msra.mxu0 0.0
        %1152 = vmatprep.subr.mxu0 0.0
        %1153 = vmatpush1.msra.mxu0 0.0
        %1154 = vmatprep.subr.mxu0 0.0
        %1155 = vmatpush1.msra.mxu0 0.0
        %1156 = vmatprep.subr.mxu0 0.0
        %1157 = vmatpush1.msra.mxu0 0.0
        %1158 = vmatprep.subr.mxu0 0.0
        %1159 = vmatpush1.msra.mxu0 0.0
        %1160 = vmatprep.subr.mxu0 0.0
        %1161 = vmatpush1.msra.mxu0 0.0
        %1162 = vmatprep.subr.mxu0 0.0
        %1163 = vmatpush1.msra.mxu0 0.0
        %1164 = vmatprep.subr.mxu0 0.0
        %1165 = vmatpush1.msra.mxu0 0.0
        %1166 = vmatprep.subr.mxu0 0.0
        %1167 = vmatpush1.msra.mxu0 0.0
        %1168 = vmatprep.subr.mxu0 0.0
        %1169 = vmatpush1.msra.mxu0 0.0
        %1170 = vmatprep.subr.mxu0 0.0
        %1171 = vmatpush1.msra.mxu0 0.0
        %1172 = vmatprep.subr.mxu0 0.0
        %1173 = vmatpush1.msra.mxu0 0.0
        %1174 = vmatprep.subr.mxu0 0.0
        %1175 = vmatpush1.msra.mxu0 0.0
        %1176 = vmatprep.subr.mxu0 0.0
        %1177 = vmatpush1.msra.mxu0 0.0
        %1178 = vmatprep.subr.mxu0 0.0
        %1179 = vmatpush1.msra.mxu0 0.0
        %1180 = vmatprep.subr.mxu0 0.0
        %1181 = vmatpush1.msra.mxu0 0.0
        %1182 = vmatprep.subr.mxu0 0.0
        %1183 = vmatpush1.msra.mxu0 0.0
        %1184 = vmatprep.subr.mxu0 0.0
        %1185 = vmatpush1.msra.mxu0 0.0
        %1186 = vmatprep.subr.mxu0 0.0
        %1187 = vmatpush1.msra.mxu0 0.0
        %1188 = vmatprep.subr.mxu0 0.0
        %1189 = vmatpush1.msra.mxu0 0.0
        %1190 = vmatprep.subr.mxu0 0.0
        %1191 = vmatpush1.msra.mxu0 0.0
        %1192 = vmatprep.subr.mxu0 0.0
        %1193 = vmatpush1.msra.mxu0 0.0
        %1194 = vmatprep.subr.mxu0 0.0
        %1195 = vmatpush1.msra.mxu0 0.0
        %1196 = vmatprep.subr.mxu0 0.0
        %1197 = vmatpush1.msra.mxu0 0.0
        %1198 = vmatprep.subr.mxu0 0.0
        %1199 = vmatpush1.msra.mxu0 0.0
        %1200 = vmatprep.subr.mxu0 0.0
        %1201 = vmatpush1.msra.mxu0 0.0
        %1202 = vmatprep.subr.mxu0 0.0
        %1203 = vmatpush1.msra.mxu0 0.0
        %1204 = vmatprep.subr.mxu0 0.0
        %1205 = vmatpush1.msra.mxu0 0.0
        %1206 = vmatprep.mubr.f32.mxu0 0.0
        %1207 = vmatmul.mubr.f32.gmra.mrb[0].mxu0 %v1138
        %v1208 = vpop.f32.mrb[0].mxu0
        %v1209 = vadd.f32 0.0, %v1208
        %v1210 = vpop.f32.mrb[0].mxu0
        %1211 = vdwg.mxu0
        %v1212 = vsel %vm493, %v753, 0
        %v1214 = vsel %vm769, %v261, 0
        %1216 = vmatprep.subr.mxu0 0.0
        %1217 = vmatpush1.msra.mxu0 %v1214
        %1218 = vmatprep.subr.mxu0 0.0
        %1219 = vmatpush1.msra.mxu0 0.0
        %1220 = vmatprep.subr.mxu0 0.0
        %1221 = vmatpush1.msra.mxu0 0.0
        %1222 = vmatprep.subr.mxu0 0.0
        %1223 = vmatpush1.msra.mxu0 0.0
        %1224 = vmatprep.subr.mxu0 0.0
        %1225 = vmatpush1.msra.mxu0 0.0
        %1226 = vmatprep.subr.mxu0 0.0
        %1227 = vmatpush1.msra.mxu0 0.0
        %1228 = vmatprep.subr.mxu0 0.0
        %1229 = vmatpush1.msra.mxu0 0.0
        %1230 = vmatprep.subr.mxu0 0.0
        %1231 = vmatpush1.msra.mxu0 0.0
        %1232 = vmatprep.subr.mxu0 0.0
        %1233 = vmatpush1.msra.mxu0 0.0
        %1234 = vmatprep.subr.mxu0 0.0
        %1235 = vmatpush1.msra.mxu0 0.0
        %1236 = vmatprep.subr.mxu0 0.0
        %1237 = vmatpush1.msra.mxu0 0.0
        %1238 = vmatprep.subr.mxu0 0.0
        %1239 = vmatpush1.msra.mxu0 0.0
        %1240 = vmatprep.subr.mxu0 0.0
        %1241 = vmatpush1.msra.mxu0 0.0
        %1242 = vmatprep.subr.mxu0 0.0
        %1243 = vmatpush1.msra.mxu0 0.0
        %1244 = vmatprep.subr.mxu0 0.0
        %1245 = vmatpush1.msra.mxu0 0.0
        %1246 = vmatprep.subr.mxu0 0.0
        %1247 = vmatpush1.msra.mxu0 0.0
        %1248 = vmatprep.subr.mxu0 0.0
        %1249 = vmatpush1.msra.mxu0 0.0
        %1250 = vmatprep.subr.mxu0 0.0
        %1251 = vmatpush1.msra.mxu0 0.0
        %1252 = vmatprep.subr.mxu0 0.0
        %1253 = vmatpush1.msra.mxu0 0.0
        %1254 = vmatprep.subr.mxu0 0.0
        %1255 = vmatpush1.msra.mxu0 0.0
        %1256 = vmatprep.subr.mxu0 0.0
        %1257 = vmatpush1.msra.mxu0 0.0
        %1258 = vmatprep.subr.mxu0 0.0
        %1259 = vmatpush1.msra.mxu0 0.0
        %1260 = vmatprep.subr.mxu0 0.0
        %1261 = vmatpush1.msra.mxu0 0.0
        %1262 = vmatprep.subr.mxu0 0.0
        %1263 = vmatpush1.msra.mxu0 0.0
        %1264 = vmatprep.subr.mxu0 0.0
        %1265 = vmatpush1.msra.mxu0 0.0
        %1266 = vmatprep.subr.mxu0 0.0
        %1267 = vmatpush1.msra.mxu0 0.0
        %1268 = vmatprep.subr.mxu0 0.0
        %1269 = vmatpush1.msra.mxu0 0.0
        %1270 = vmatprep.subr.mxu0 0.0
        %1271 = vmatpush1.msra.mxu0 0.0
        %1272 = vmatprep.subr.mxu0 0.0
        %1273 = vmatpush1.msra.mxu0 0.0
        %1274 = vmatprep.subr.mxu0 0.0
        %1275 = vmatpush1.msra.mxu0 0.0
        %1276 = vmatprep.subr.mxu0 0.0
        %1277 = vmatpush1.msra.mxu0 0.0
        %1278 = vmatprep.subr.mxu0 0.0
        %1279 = vmatpush1.msra.mxu0 0.0
        %1280 = vmatprep.mubr.f32.mxu0 0.0
        %1281 = vmatmul.mubr.f32.gmra.mrb[0].mxu0 %v1212
        %v1282 = vpop.f32.mrb[0].mxu0
        %v1283 = vadd.f32 0.0, %v1282
        %v1284 = vpop.f32.mrb[0].mxu0
        %1285 = vdwg.mxu0
        %v1286 = vsel %vm493, %v757, 0
        %v1288 = vsel %vm769, %v262, 0
        %1290 = vmatprep.subr.mxu0 0.0
        %1291 = vmatpush1.msra.mxu0 %v1288
        %1292 = vmatprep.subr.mxu0 0.0
        %1293 = vmatpush1.msra.mxu0 0.0
        %1294 = vmatprep.subr.mxu0 0.0
        %1295 = vmatpush1.msra.mxu0 0.0
        %1296 = vmatprep.subr.mxu0 0.0
        %1297 = vmatpush1.msra.mxu0 0.0
        %1298 = vmatprep.subr.mxu0 0.0
        %1299 = vmatpush1.msra.mxu0 0.0
        %1300 = vmatprep.subr.mxu0 0.0
        %1301 = vmatpush1.msra.mxu0 0.0
        %1302 = vmatprep.subr.mxu0 0.0
        %1303 = vmatpush1.msra.mxu0 0.0
        %1304 = vmatprep.subr.mxu0 0.0
        %1305 = vmatpush1.msra.mxu0 0.0
        %1306 = vmatprep.subr.mxu0 0.0
        %1307 = vmatpush1.msra.mxu0 0.0
        %1308 = vmatprep.subr.mxu0 0.0
        %1309 = vmatpush1.msra.mxu0 0.0
        %1310 = vmatprep.subr.mxu0 0.0
        %1311 = vmatpush1.msra.mxu0 0.0
        %1312 = vmatprep.subr.mxu0 0.0
        %1313 = vmatpush1.msra.mxu0 0.0
        %1314 = vmatprep.subr.mxu0 0.0
        %1315 = vmatpush1.msra.mxu0 0.0
        %1316 = vmatprep.subr.mxu0 0.0
        %1317 = vmatpush1.msra.mxu0 0.0
        %1318 = vmatprep.subr.mxu0 0.0
        %1319 = vmatpush1.msra.mxu0 0.0
        %1320 = vmatprep.subr.mxu0 0.0
        %1321 = vmatpush1.msra.mxu0 0.0
        %1322 = vmatprep.subr.mxu0 0.0
        %1323 = vmatpush1.msra.mxu0 0.0
        %1324 = vmatprep.subr.mxu0 0.0
        %1325 = vmatpush1.msra.mxu0 0.0
        %1326 = vmatprep.subr.mxu0 0.0
        %1327 = vmatpush1.msra.mxu0 0.0
        %1328 = vmatprep.subr.mxu0 0.0
        %1329 = vmatpush1.msra.mxu0 0.0
        %1330 = vmatprep.subr.mxu0 0.0
        %1331 = vmatpush1.msra.mxu0 0.0
        %1332 = vmatprep.subr.mxu0 0.0
        %1333 = vmatpush1.msra.mxu0 0.0
        %1334 = vmatprep.subr.mxu0 0.0
        %1335 = vmatpush1.msra.mxu0 0.0
        %1336 = vmatprep.subr.mxu0 0.0
        %1337 = vmatpush1.msra.mxu0 0.0
        %1338 = vmatprep.subr.mxu0 0.0
        %1339 = vmatpush1.msra.mxu0 0.0
        %1340 = vmatprep.subr.mxu0 0.0
        %1341 = vmatpush1.msra.mxu0 0.0
        %1342 = vmatprep.subr.mxu0 0.0
        %1343 = vmatpush1.msra.mxu0 0.0
        %1344 = vmatprep.subr.mxu0 0.0
        %1345 = vmatpush1.msra.mxu0 0.0
        %1346 = vmatprep.subr.mxu0 0.0
        %1347 = vmatpush1.msra.mxu0 0.0
        %1348 = vmatprep.subr.mxu0 0.0
        %1349 = vmatpush1.msra.mxu0 0.0
        %1350 = vmatprep.subr.mxu0 0.0
        %1351 = vmatpush1.msra.mxu0 0.0
        %1352 = vmatprep.subr.mxu0 0.0
        %1353 = vmatpush1.msra.mxu0 0.0
        %1354 = vmatprep.mubr.f32.mxu0 0.0
        %1355 = vmatmul.mubr.f32.gmra.mrb[0].mxu0 %v1286
        %v1356 = vpop.f32.mrb[0].mxu0
        %v1357 = vadd.f32 0.0, %v1356
        %v1358 = vpop.f32.mrb[0].mxu0
        %1359 = vdwg.mxu0
        %v1368 = vrot.slane %v913, 7
        %v1369 = vsel %vm478, %v1368, %v839
        %v1370 = vrot.slane %v987, 6
        %v1371 = vsel %vm480, %v1370, %v1369
        %v1372 = vrot.slane %v1061, 5
        %v1373 = vsel %vm482, %v1372, %v1371
        %v1374 = vrot.slane %v1135, 4
        %v1375 = vsel %vm484, %v1374, %v1373
        %v1376 = vrot.slane %v1209, 3
        %v1377 = vsel %vm486, %v1376, %v1375
        %v1378 = vrot.slane %v1283, 2
        %v1379 = vsel %vm488, %v1378, %v1377
        %v1380 = vrot.slane %v1357, 1
        %v1381 = vsel %vm490, %v1380, %v1379
        %1383 = vst.msk [vmem:[%s243] sm:$0xff] %vm286, %v1381
        %s1384 = sand.u32 %s120, 1
        %s1385 = scalar_lea.sflag [#allocation4], %s1384
        %s1386 = sand.u32 %s120, 1
        %s1387 = smul.addr %s1386, 8
        %s1388 = scalar_lea.vmem [#allocation5], %s1387
        %p1389 = scmp.lt.s32.totalorder %s23, 1
        %s1390 = scalar_select %p1389, %s23, 1
        %s1391 = smul.addr %s1390, 8
        %s1392 = scalar_lea.vmem %s5, %s1391
        // Predicated region
        $region41: #{tpu_custom_call.1} parent=35 // pred_check
          %p1393 = pneg %p130
        $region42: #{tpu_custom_call.1} parent=35 // pred_check_branch
          %1395 = sbr.rel (%p1393) target = $region44
        $region43: #{tpu_custom_call.1} parent=35 // pred_region
          %s1397 = ssub.s32 128, 128
          %1398 = vsyncadd %s1385, %s1397
          %s1399 = smul.addr %s23, 128
          %s1400 = scalar_lea.hbm %s4, %s1399
          %s1402 = sshll.u32 %s1388, 4
          %s1403 = int_to_ptr.vmem [resolvable:$true] %s1402
          %1405 = dma.vmem_to_hbm [thread:$0]  %s1403, 128, %s1400, %s1385
        $region44: #{tpu_custom_call.1} parent=35 // pred_fallthru
          _
        // Predicated region
        $region45: #{tpu_custom_call.1} parent=35 // pred_check
          %p1406 = pneg %p156
        $region46: #{tpu_custom_call.1} parent=35 // pred_check_branch
          %1408 = sbr.rel (%p1406) target = $region48
        $region47: #{tpu_custom_call.1} parent=35 // pred_region
          _
        $region48: #{tpu_custom_call.1} parent=35 // pred_fallthru
          _
      $region36: #{tpu_custom_call.1} parent=5 // pred_fallthru
        _
      %p1409 = scmp.le.s32.totalorder 2, %s18
      // Predicated region
      $region49: #{tpu_custom_call.1} parent=5 // pred_check
        %p1410 = pneg %p1409
      $region50: #{tpu_custom_call.1} parent=5 // pred_check_branch
        %1412 = sbr.rel (%p1410) target = $region52
      $region51: #{tpu_custom_call.1} parent=5 // pred_region
        %s1413 = ssub.s32 %s18, 2
        // Predicated region
        $region53: #{tpu_custom_call.1} parent=51 // pred_check
          %p1414 = pneg %p136
        $region54: #{tpu_custom_call.1} parent=51 // pred_check_branch
          %1416 = sbr.rel (%p1414) target = $region56
        $region55: #{tpu_custom_call.1} parent=51 // pred_region
          %s1417 = sand.u32 %s121, 1
          %s1418 = scalar_lea.sflag [#allocation4], %s1417
          %s1419 = sand.u32 %s121, 1
          %s1420 = smul.addr %s1419, 8
          %s1421 = scalar_lea.vmem [#allocation5], %s1420
          %1422 = dma.done %s1418, 128
        $region56: #{tpu_custom_call.1} parent=51 // pred_fallthru
          _
        // Predicated region
        $region57: #{tpu_custom_call.1} parent=51 // pred_check
          %p1423 = pneg %p162
        $region58: #{tpu_custom_call.1} parent=51 // pred_check_branch
          %1425 = sbr.rel (%p1423) target = $region60
        $region59: #{tpu_custom_call.1} parent=51 // pred_region
          %p1426 = scmp.lt.s32.totalorder %s24, 1
          %s1427 = scalar_select %p1426, %s24, 1
          %s1428 = smul.addr %s1427, 8
          %s1429 = scalar_lea.vmem %s5, %s1428
        $region60: #{tpu_custom_call.1} parent=51 // pred_fallthru
          _
      $region52: #{tpu_custom_call.1} parent=5 // pred_fallthru
        _
    $region6: #{tpu_custom_call.1} parent=1 // loop_footer
      %s22 = sadd.s32 1, %s18
    $region7: #{tpu_custom_call.1} parent=1 // loop_footer_branch
      %17 = sbr.rel target = $region3
    $region8: #{tpu_custom_call.1} parent=1 // loop_exit
      _
    %1430 = vsyncpa [#allocation3], 1
    %s1431 = scalar_lea.sflag [#allocation3], 1
    %1432 = vsyncpa %s1431, 1
    %1433 = vsyncpa [#allocation4], 1
    %s1434 = scalar_lea.sflag [#allocation4], 1
    %1435 = vsyncpa %s1434, 1

</llo_original>
